<compile_context>
chip_gen: v7x
topology: tpu7x:2x2x1
jax: 0.10.0
libtpu: 0.0.40
codegen_flags: <defaults>
</compile_context>

<pallas_src>
import jax
import jax.numpy as jnp
import numpy as np
from jax.experimental import pallas as pl
from jax.experimental.pallas import tpu as pltpu


def _round_up(x, m):
    return (x + m - 1) // m * m


def p2vp_kernel(w_idx_ref, c_idx_ref,        # scalar-prefetch (SMEM) index vectors
                w_hbm, c_hbm,                # full embedding tables (HBM, pl.ANY)
                out_ref,                     # (3, TILE_B) lane-dense output block
                w_rows, c_rows, cw_rows,     # (TILE_B, D) VMEM gather buffers
                sems):                       # DMA semaphores, shape (3,)
    tile_b = w_rows.shape[0]
    base = pl.program_id(0) * tile_b

    # Issue all row-gather DMAs for this tile; they are all in flight at once.
    @pl.loop(0, tile_b)
    def _(r):
        wi = w_idx_ref[base + r]
        ci = c_idx_ref[base + r]
        pltpu.make_async_copy(w_hbm.at[wi], w_rows.at[r], sems.at[0]).start()
        pltpu.make_async_copy(c_hbm.at[ci], c_rows.at[r], sems.at[1]).start()
        pltpu.make_async_copy(c_hbm.at[wi], cw_rows.at[r], sems.at[2]).start()

    # Wait for all gathers (every copy has identical size, so generic waits drain
    # the semaphores exactly).
    @pl.loop(0, tile_b)
    def _(r):
        pltpu.make_async_copy(w_hbm.at[0], w_rows.at[r], sems.at[0]).wait()
        pltpu.make_async_copy(c_hbm.at[0], c_rows.at[r], sems.at[1]).wait()
        pltpu.make_async_copy(c_hbm.at[0], cw_rows.at[r], sems.at[2]).wait()

    # Fused single pass over the (TILE_B, D) tile: load w / c / cw once, reuse.
    w = w_rows[...]
    c = c_rows[...]
    cw = cw_rows[...]

    score = jnp.sum(w * c, axis=1)                        # (TILE_B,)
    score_w = jnp.sum(w * cw, axis=1)
    score_c = (jnp.sqrt(jnp.sum(w * w, axis=1))
               - jnp.sqrt(jnp.sum(cw * cw, axis=1)))

    out_ref[0, :] = score
    out_ref[1, :] = score_w
    out_ref[2, :] = score_c


def p2vp_forward(W, C, w_idx, c_idx, tile_b=None):
    """Pallas equivalent of P2VP.forward: returns (score, score_w, score_c), each (B,)."""
    W = W.astype(jnp.float32)
    C = C.astype(jnp.float32)
    V, D = W.shape
    B = int(w_idx.shape[0])

    # TILE_B: multiple of 128 (lane-dense output blocks), capped at 512.
    if tile_b is None:
        tile_b = min(512, _round_up(max(B, 1), 128))
    tile_b = _round_up(tile_b, 128)
    b_pad = _round_up(B, tile_b)
    num_tiles = b_pad // tile_b

    pad = b_pad - B
    w_idx_p = jnp.pad(w_idx.astype(jnp.int32), (0, pad))   # pad with row 0 (valid)
    c_idx_p = jnp.pad(c_idx.astype(jnp.int32), (0, pad))

    grid_spec = pltpu.PrefetchScalarGridSpec(
        num_scalar_prefetch=2,
        grid=(num_tiles,),
        in_specs=[
            pl.BlockSpec(memory_space=pl.ANY),   # W stays in HBM, gathered manually
            pl.BlockSpec(memory_space=pl.ANY),   # C stays in HBM, gathered manually
        ],
        out_specs=pl.BlockSpec((3, tile_b), lambda t, wi, ci: (0, t)),
        scratch_shapes=[
            pltpu.VMEM((tile_b, D), jnp.float32),   # W[w_idx] rows
            pltpu.VMEM((tile_b, D), jnp.float32),   # C[c_idx] rows
            pltpu.VMEM((tile_b, D), jnp.float32),   # C[w_idx] rows
            pltpu.SemaphoreType.DMA((3,)),
        ],
    )

    cost = pl.CostEstimate(
        flops=8 * b_pad * D,                       # 4 products + 4 reductions per pair
        transcendentals=2 * b_pad,                 # 2 sqrt per pair
        bytes_accessed=b_pad * (3 * D * 4 + 12 + 8),
    )

    out = pl.pallas_call(
        p2vp_kernel,
        grid_spec=grid_spec,
        out_shape=jax.ShapeDtypeStruct((3, b_pad), jnp.float32),
        compiler_params=pltpu.CompilerParams(
            dimension_semantics=("parallel",)),
        cost_estimate=cost,
    )(w_idx_p, c_idx_p, W, C)

    return out[0, :B], out[1, :B], out[2, :B]


def _reference(W, C, w_idx, c_idx):
    """Plain-JAX reference matching the torch semantics."""
    wb = W[w_idx]          # W(w_idx)
    cb = C[c_idx]          # C(c_idx)
    cwb = C[w_idx]         # C(w_idx)
    score = jnp.sum(wb * cb, axis=1)
    score_w = jnp.sum(wb * cwb, axis=1)
    score_c = jnp.sqrt(jnp.sum(wb * wb, axis=1)) - jnp.sqrt(jnp.sum(cwb * cwb, axis=1))
    return score, score_w, score_c


if __name__ == "__main__":
    V, D, B = 64, 32, 8  # vocab (len(d.word_counts)), embedding dim, batch

    key = jax.random.PRNGKey(0)
    kW, kC, kwi, kci = jax.random.split(key, 4)

    # Deterministic parameter init (torch.nn.Embedding ~ N(0,1), padding_idx=0 row zeroed).
    W = jax.random.normal(kW, (V, D), dtype=jnp.float32)
    C = jax.random.normal(kC, (V, D), dtype=jnp.float32)
    W = W.at[0].set(0.0)
    C = C.at[0].set(0.0)

    # Index batches (include the padding index 0 to exercise it).
    w_idx = jax.random.randint(kwi, (B,), 0, V, dtype=jnp.int32)
    c_idx = jax.random.randint(kci, (B,), 0, V, dtype=jnp.int32)

    score, score_w, score_c = p2vp_forward(W, C, w_idx, c_idx)
    jax.block_until_ready((score, score_w, score_c))

    ref_s, ref_sw, ref_sc = _reference(W, C, w_idx, c_idx)
    assert np.allclose(np.asarray(score), np.asarray(ref_s), atol=1e-4, rtol=1e-4)
    assert np.allclose(np.asarray(score_w), np.asarray(ref_sw), atol=1e-4, rtol=1e-4)
    assert np.allclose(np.asarray(score_c), np.asarray(ref_sc), atol=1e-4, rtol=1e-4)

    print("KERNEL_OK")
</pallas_src>

<mosaic_0001>
module attributes {stable_mosaic.version = 11 : i64} {
  func.func @p2vp_kernel(%arg0: i32, %arg1: memref<128xi32, #tpu.memory_space<smem>>, %arg2: memref<128xi32, #tpu.memory_space<smem>>, %arg3: memref<64x32xf32, #tpu.memory_space<any>>, %arg4: memref<64x32xf32, #tpu.memory_space<any>>, %arg5: memref<3x128xf32, #tpu.memory_space<vmem>>, %arg6: memref<128x32xf32, #tpu.memory_space<vmem>>, %arg7: memref<128x32xf32, #tpu.memory_space<vmem>>, %arg8: memref<128x32xf32, #tpu.memory_space<vmem>>, %arg9: memref<3x!tpu.dma_semaphore, #tpu.memory_space<semaphore_mem>>) attributes {dimension_semantics = [#tpu.dimension_semantics<parallel>], iteration_bounds = array<i64: 1>, scalar_prefetch = 2 : i64, scratch_operands = 4 : i64, tpu.core_type = #tpu.core_type<tc>, window_params = [{}, {}, {transform_indices = @transform_2, window_bounds = array<i64: 3, 128>}]} {
    %c128_i32 = arith.constant 128 : i32
    %0 = arith.muli %arg0, %c128_i32 : i32
    %c0_i32 = arith.constant 0 : i32
    %c128_i32_0 = arith.constant 128 : i32
    %1 = arith.addi %c0_i32, %c128_i32_0 : i32
    %c1_i32 = arith.constant 1 : i32
    scf.for %arg10 = %c0_i32 to %1 step %c1_i32  : i32 {
      %c1_i32_18 = arith.constant 1 : i32
      %26 = arith.muli %arg10, %c1_i32_18 : i32
      %c0_i32_19 = arith.constant 0 : i32
      %27 = arith.addi %c0_i32_19, %26 : i32
      %28 = arith.addi %0, %27 : i32
      %29 = arith.index_cast %28 : i32 to index
      %30 = memref.load %arg1[%29] : memref<128xi32, #tpu.memory_space<smem>>
      %31 = arith.addi %0, %27 : i32
      %32 = arith.index_cast %31 : i32 to index
      %33 = memref.load %arg2[%32] : memref<128xi32, #tpu.memory_space<smem>>
      %c0_i32_20 = arith.constant 0 : i32
      %c0_i32_21 = arith.constant 0 : i32
      %34 = tpu.memref_slice %arg3[%30, %c0_i32_21] : memref<64x32xf32, #tpu.memory_space<any>> -> memref<1x32xf32, #tpu.memory_space<any>>
      %35 = tpu.memref_squeeze %34 : memref<1x32xf32, #tpu.memory_space<any>> -> memref<32xf32, #tpu.memory_space<any>>
      %c0_i32_22 = arith.constant 0 : i32
      %36 = tpu.memref_slice %arg6[%27, %c0_i32_22] : memref<128x32xf32, #tpu.memory_space<vmem>> -> memref<1x32xf32, #tpu.memory_space<vmem>>
      %37 = tpu.memref_squeeze %36 : memref<1x32xf32, #tpu.memory_space<vmem>> -> memref<32xf32, #tpu.memory_space<vmem>>
      %38 = tpu.memref_slice %arg9[%c0_i32_20] : memref<3x!tpu.dma_semaphore, #tpu.memory_space<semaphore_mem>> -> memref<1x!tpu.dma_semaphore, #tpu.memory_space<semaphore_mem>>
      %39 = tpu.memref_squeeze %38 : memref<1x!tpu.dma_semaphore, #tpu.memory_space<semaphore_mem>> -> memref<!tpu.dma_semaphore, #tpu.memory_space<semaphore_mem>>
      tpu.enqueue_dma source(%35 : memref<32xf32, #tpu.memory_space<any>>) target(%37 : memref<32xf32, #tpu.memory_space<vmem>>) target_semaphore(%39 : memref<!tpu.dma_semaphore, #tpu.memory_space<semaphore_mem>>)
      %c1_i32_23 = arith.constant 1 : i32
      %c0_i32_24 = arith.constant 0 : i32
      %40 = tpu.memref_slice %arg4[%33, %c0_i32_24] : memref<64x32xf32, #tpu.memory_space<any>> -> memref<1x32xf32, #tpu.memory_space<any>>
      %41 = tpu.memref_squeeze %40 : memref<1x32xf32, #tpu.memory_space<any>> -> memref<32xf32, #tpu.memory_space<any>>
      %c0_i32_25 = arith.constant 0 : i32
      %42 = tpu.memref_slice %arg7[%27, %c0_i32_25] : memref<128x32xf32, #tpu.memory_space<vmem>> -> memref<1x32xf32, #tpu.memory_space<vmem>>
      %43 = tpu.memref_squeeze %42 : memref<1x32xf32, #tpu.memory_space<vmem>> -> memref<32xf32, #tpu.memory_space<vmem>>
      %44 = tpu.memref_slice %arg9[%c1_i32_23] : memref<3x!tpu.dma_semaphore, #tpu.memory_space<semaphore_mem>> -> memref<1x!tpu.dma_semaphore, #tpu.memory_space<semaphore_mem>>
      %45 = tpu.memref_squeeze %44 : memref<1x!tpu.dma_semaphore, #tpu.memory_space<semaphore_mem>> -> memref<!tpu.dma_semaphore, #tpu.memory_space<semaphore_mem>>
      tpu.enqueue_dma source(%41 : memref<32xf32, #tpu.memory_space<any>>) target(%43 : memref<32xf32, #tpu.memory_space<vmem>>) target_semaphore(%45 : memref<!tpu.dma_semaphore, #tpu.memory_space<semaphore_mem>>)
      %c2_i32 = arith.constant 2 : i32
      %c0_i32_26 = arith.constant 0 : i32
      %46 = tpu.memref_slice %arg4[%30, %c0_i32_26] : memref<64x32xf32, #tpu.memory_space<any>> -> memref<1x32xf32, #tpu.memory_space<any>>
      %47 = tpu.memref_squeeze %46 : memref<1x32xf32, #tpu.memory_space<any>> -> memref<32xf32, #tpu.memory_space<any>>
      %c0_i32_27 = arith.constant 0 : i32
      %48 = tpu.memref_slice %arg8[%27, %c0_i32_27] : memref<128x32xf32, #tpu.memory_space<vmem>> -> memref<1x32xf32, #tpu.memory_space<vmem>>
      %49 = tpu.memref_squeeze %48 : memref<1x32xf32, #tpu.memory_space<vmem>> -> memref<32xf32, #tpu.memory_space<vmem>>
      %50 = tpu.memref_slice %arg9[%c2_i32] : memref<3x!tpu.dma_semaphore, #tpu.memory_space<semaphore_mem>> -> memref<1x!tpu.dma_semaphore, #tpu.memory_space<semaphore_mem>>
      %51 = tpu.memref_squeeze %50 : memref<1x!tpu.dma_semaphore, #tpu.memory_space<semaphore_mem>> -> memref<!tpu.dma_semaphore, #tpu.memory_space<semaphore_mem>>
      tpu.enqueue_dma source(%47 : memref<32xf32, #tpu.memory_space<any>>) target(%49 : memref<32xf32, #tpu.memory_space<vmem>>) target_semaphore(%51 : memref<!tpu.dma_semaphore, #tpu.memory_space<semaphore_mem>>)
    }
    %c128_i32_1 = arith.constant 128 : i32
    %c0_i32_2 = arith.constant 0 : i32
    %c128_i32_3 = arith.constant 128 : i32
    %2 = arith.addi %c0_i32_2, %c128_i32_3 : i32
    %c1_i32_4 = arith.constant 1 : i32
    scf.for %arg10 = %c0_i32_2 to %2 step %c1_i32_4  : i32 {
      %c1_i32_18 = arith.constant 1 : i32
      %26 = arith.muli %arg10, %c1_i32_18 : i32
      %c0_i32_19 = arith.constant 0 : i32
      %27 = arith.addi %c0_i32_19, %26 : i32
      %c0_i32_20 = arith.constant 0 : i32
      %c0_i32_21 = arith.constant 0 : i32
      %c0_i32_22 = arith.constant 0 : i32
      %28 = tpu.memref_slice %arg3[%c0_i32_20, %c0_i32_22] : memref<64x32xf32, #tpu.memory_space<any>> -> memref<1x32xf32, #tpu.memory_space<any>>
      %29 = tpu.memref_squeeze %28 : memref<1x32xf32, #tpu.memory_space<any>> -> memref<32xf32, #tpu.memory_space<any>>
      %c0_i32_23 = arith.constant 0 : i32
      %30 = tpu.memref_slice %arg6[%27, %c0_i32_23] : memref<128x32xf32, #tpu.memory_space<vmem>> -> memref<1x32xf32, #tpu.memory_space<vmem>>
      %31 = tpu.memref_squeeze %30 : memref<1x32xf32, #tpu.memory_space<vmem>> -> memref<32xf32, #tpu.memory_space<vmem>>
      %32 = tpu.memref_slice %arg9[%c0_i32_21] : memref<3x!tpu.dma_semaphore, #tpu.memory_space<semaphore_mem>> -> memref<1x!tpu.dma_semaphore, #tpu.memory_space<semaphore_mem>>
      %33 = tpu.memref_squeeze %32 : memref<1x!tpu.dma_semaphore, #tpu.memory_space<semaphore_mem>> -> memref<!tpu.dma_semaphore, #tpu.memory_space<semaphore_mem>>
      tpu.wait_dma2 semaphore(%33 : memref<!tpu.dma_semaphore, #tpu.memory_space<semaphore_mem>>) src(%29 : memref<32xf32, #tpu.memory_space<any>>) dst(%31 : memref<32xf32, #tpu.memory_space<vmem>>)
      %c0_i32_24 = arith.constant 0 : i32
      %c1_i32_25 = arith.constant 1 : i32
      %c0_i32_26 = arith.constant 0 : i32
      %34 = tpu.memref_slice %arg4[%c0_i32_24, %c0_i32_26] : memref<64x32xf32, #tpu.memory_space<any>> -> memref<1x32xf32, #tpu.memory_space<any>>
      %35 = tpu.memref_squeeze %34 : memref<1x32xf32, #tpu.memory_space<any>> -> memref<32xf32, #tpu.memory_space<any>>
      %c0_i32_27 = arith.constant 0 : i32
      %36 = tpu.memref_slice %arg7[%27, %c0_i32_27] : memref<128x32xf32, #tpu.memory_space<vmem>> -> memref<1x32xf32, #tpu.memory_space<vmem>>
      %37 = tpu.memref_squeeze %36 : memref<1x32xf32, #tpu.memory_space<vmem>> -> memref<32xf32, #tpu.memory_space<vmem>>
      %38 = tpu.memref_slice %arg9[%c1_i32_25] : memref<3x!tpu.dma_semaphore, #tpu.memory_space<semaphore_mem>> -> memref<1x!tpu.dma_semaphore, #tpu.memory_space<semaphore_mem>>
      %39 = tpu.memref_squeeze %38 : memref<1x!tpu.dma_semaphore, #tpu.memory_space<semaphore_mem>> -> memref<!tpu.dma_semaphore, #tpu.memory_space<semaphore_mem>>
      tpu.wait_dma2 semaphore(%39 : memref<!tpu.dma_semaphore, #tpu.memory_space<semaphore_mem>>) src(%35 : memref<32xf32, #tpu.memory_space<any>>) dst(%37 : memref<32xf32, #tpu.memory_space<vmem>>)
      %c0_i32_28 = arith.constant 0 : i32
      %c2_i32 = arith.constant 2 : i32
      %c0_i32_29 = arith.constant 0 : i32
      %40 = tpu.memref_slice %arg4[%c0_i32_28, %c0_i32_29] : memref<64x32xf32, #tpu.memory_space<any>> -> memref<1x32xf32, #tpu.memory_space<any>>
      %41 = tpu.memref_squeeze %40 : memref<1x32xf32, #tpu.memory_space<any>> -> memref<32xf32, #tpu.memory_space<any>>
      %c0_i32_30 = arith.constant 0 : i32
      %42 = tpu.memref_slice %arg8[%27, %c0_i32_30] : memref<128x32xf32, #tpu.memory_space<vmem>> -> memref<1x32xf32, #tpu.memory_space<vmem>>
      %43 = tpu.memref_squeeze %42 : memref<1x32xf32, #tpu.memory_space<vmem>> -> memref<32xf32, #tpu.memory_space<vmem>>
      %44 = tpu.memref_slice %arg9[%c2_i32] : memref<3x!tpu.dma_semaphore, #tpu.memory_space<semaphore_mem>> -> memref<1x!tpu.dma_semaphore, #tpu.memory_space<semaphore_mem>>
      %45 = tpu.memref_squeeze %44 : memref<1x!tpu.dma_semaphore, #tpu.memory_space<semaphore_mem>> -> memref<!tpu.dma_semaphore, #tpu.memory_space<semaphore_mem>>
      tpu.wait_dma2 semaphore(%45 : memref<!tpu.dma_semaphore, #tpu.memory_space<semaphore_mem>>) src(%41 : memref<32xf32, #tpu.memory_space<any>>) dst(%43 : memref<32xf32, #tpu.memory_space<vmem>>)
    }
    %c128_i32_5 = arith.constant 128 : i32
    %c0 = arith.constant 0 : index
    %c0_6 = arith.constant 0 : index
    %3 = vector.load %arg6[%c0, %c0_6] : memref<128x32xf32, #tpu.memory_space<vmem>>, vector<128x32xf32>
    %c0_7 = arith.constant 0 : index
    %c0_8 = arith.constant 0 : index
    %4 = vector.load %arg7[%c0_7, %c0_8] : memref<128x32xf32, #tpu.memory_space<vmem>>, vector<128x32xf32>
    %c0_9 = arith.constant 0 : index
    %c0_10 = arith.constant 0 : index
    %5 = vector.load %arg8[%c0_9, %c0_10] : memref<128x32xf32, #tpu.memory_space<vmem>>, vector<128x32xf32>
    %6 = arith.mulf %3, %4 : vector<128x32xf32>
    %cst = arith.constant dense<0.000000e+00> : vector<128xf32>
    %7 = vector.multi_reduction <add>, %6, %cst [1] : vector<128x32xf32> to vector<128xf32>
    %8 = arith.mulf %3, %5 : vector<128x32xf32>
    %cst_11 = arith.constant dense<0.000000e+00> : vector<128xf32>
    %9 = vector.multi_reduction <add>, %8, %cst_11 [1] : vector<128x32xf32> to vector<128xf32>
    %10 = arith.mulf %3, %3 : vector<128x32xf32>
    %cst_12 = arith.constant dense<0.000000e+00> : vector<128xf32>
    %11 = vector.multi_reduction <add>, %10, %cst_12 [1] : vector<128x32xf32> to vector<128xf32>
    %12 = math.sqrt %11 : vector<128xf32>
    %13 = arith.mulf %5, %5 : vector<128x32xf32>
    %cst_13 = arith.constant dense<0.000000e+00> : vector<128xf32>
    %14 = vector.multi_reduction <add>, %13, %cst_13 [1] : vector<128x32xf32> to vector<128xf32>
    %15 = math.sqrt %14 : vector<128xf32>
    %16 = arith.subf %12, %15 : vector<128xf32>
    %c0_14 = arith.constant 0 : index
    %c0_15 = arith.constant 0 : index
    %17 = vector.load %arg5[%c0_14, %c0_15] : memref<3x128xf32, #tpu.memory_space<vmem>>, vector<1x128xf32>
    %18 = vector.shape_cast %17 : vector<1x128xf32> to vector<128xf32>
    %19 = vector.shape_cast %7 : vector<128xf32> to vector<1x128xf32>
    tpu.vector_store %arg5[%c0_14, %c0_15], %19 {strides = array<i32>} : memref<3x128xf32, #tpu.memory_space<vmem>>, vector<1x128xf32>,
    %c1 = arith.constant 1 : index
    %c0_16 = arith.constant 0 : index
    %20 = vector.load %arg5[%c1, %c0_16] : memref<3x128xf32, #tpu.memory_space<vmem>>, vector<1x128xf32>
    %21 = vector.shape_cast %20 : vector<1x128xf32> to vector<128xf32>
    %22 = vector.shape_cast %9 : vector<128xf32> to vector<1x128xf32>
    tpu.vector_store %arg5[%c1, %c0_16], %22 {strides = array<i32>} : memref<3x128xf32, #tpu.memory_space<vmem>>, vector<1x128xf32>,
    %c2 = arith.constant 2 : index
    %c0_17 = arith.constant 0 : index
    %23 = vector.load %arg5[%c2, %c0_17] : memref<3x128xf32, #tpu.memory_space<vmem>>, vector<1x128xf32>
    %24 = vector.shape_cast %23 : vector<1x128xf32> to vector<128xf32>
    %25 = vector.shape_cast %16 : vector<128xf32> to vector<1x128xf32>
    tpu.vector_store %arg5[%c2, %c0_17], %25 {strides = array<i32>} : memref<3x128xf32, #tpu.memory_space<vmem>>, vector<1x128xf32>,
    return
  }
  func.func @transform_2(%arg0: i32, %arg1: memref<128xi32, #tpu.memory_space<smem>>, %arg2: memref<128xi32, #tpu.memory_space<smem>>) -> (i32, i32) {
    %c0_i32 = arith.constant 0 : i32
    %c0_i32_0 = arith.constant 0 : i32
    return %c0_i32, %arg0 : i32, i32
  }
}

</mosaic_0001>

<llo_original>
// kernel: tpu_custom_call.1
$region0: #{tpu_custom_call.1}
  #allocation0 [shape = 'u32[]', space=smem, size = 0x4, offset = 0x4, fixed_abs, tag = 'smem constant byte address 0x4 - core index']
  #allocation1 [shape = 'u32[144,128]{1,0:T(1,128)}', space=vmem, size = 0x12000, scoped, tag = 'internal scratch']
  #allocation2 [shape = 'f32[128,32]{1,0:T(8,128)}', space=vmem, size = 0x10000, scoped, tag = 'scratch operand']
  #allocation3 [shape = 'f32[128,32]{1,0:T(8,128)}', space=vmem, size = 0x10000, scoped, tag = 'scratch operand']
  #allocation4 [shape = 'f32[128,32]{1,0:T(8,128)}', space=vmem, size = 0x10000, scoped, tag = 'scratch operand']
  #allocation5 [shape = 's32[3]{0}', space=sflag, size = 0xc, scoped, tag = 'scratch operand']
  #allocation6 [shape = 's32[1]{0}', space=sflag, size = 0x4, scoped, tag = 'scoped memory for tpu_custom_call.1']
  #allocation7 [shape = 'u8[512]{0}', space=smem, size = 0x200, scoped, tag = 'prefetched SMEM operand 0']
  #allocation8 [shape = 'u8[512]{0}', space=smem, size = 0x200, scoped, tag = 'prefetched SMEM operand 1']
  #allocation11 [shape = 's32[]', space=sflag, size = 0x4, offset = 0, fixed_abs, tag = 'sflag constant byte address 0x0 - dummy sync flag']
  #allocation12 [shape = 's32[]', space=sflag, size = 0x4, offset = 0, fixed_abs, tag = 'sflag constant byte address 0x0 - dummy sync flag']
  #allocation13 [shape = 's32[]', space=sflag, size = 0x4, offset = 0, fixed_abs, tag = 'sflag constant byte address 0x0 - dummy sync flag']
  %s0 = inlined_call_operand.vmem [shape: s32[128], index: 0, kind: input, shape index: {}]
  %s1 = inlined_call_operand.vmem [shape: s32[128], index: 1, kind: input, shape index: {}]
  %s2 = inlined_call_operand.vmem [shape: f32[64,32], index: 2, kind: input, shape index: {}]
  %s3 = inlined_call_operand.vmem [shape: f32[64,32], index: 3, kind: input, shape index: {}]
  %s4 = inlined_call_operand.hbm [shape: f32[3,128], index: 4, kind: output, shape index: {}]
  %s5 = sld [smem:[#allocation0]]
  $region114: #{tpu_custom_call.1} parent=0
    _
  %s7 = ssub.s32 1, %s5
  %s8 = scalar_select 0, %s7, %s5
  %s9 = sshll.u32 %s0, 4
  %s10 = int_to_ptr.vmem [resolvable:$true] %s9
  %12 = dma.vmem_to_smem %s10, 16, [#allocation7], [#allocation6]
  %s13 = sshll.u32 %s1, 4
  %s14 = int_to_ptr.vmem [resolvable:$true] %s13
  %16 = dma.vmem_to_smem %s14, 16, [#allocation8], [#allocation6]
  %17 = dma.done [#allocation6], 32
  %18 = sfence
  $region1: #{tpu_custom_call.1} parent=0
    #allocation9 [shape = 'u8[2048]{0}', space=vmem, size = 0x800, scoped, tag = 'output window, operand 0, single buffered']
    #allocation10 [shape = 's32[1]{0}', space=sflag, size = 0x4, scoped, tag = 'scoped memory for tpu_custom_call.1']
    %19 = vsyncpa [#allocation10], 0
    %s20 = smul.u32 0, 128
    loop: start=0, step=1, limit=128
    $region2: #{tpu_custom_call.1} parent=1 // loop_pre_header
      _
    $region3: #{tpu_custom_call.1} parent=1 // loop_header
      %s22 = sphi 0, %s26
      %p23 = scmp.ge.s32.totalorder %s22, 128
    $region4: #{tpu_custom_call.1} parent=1 // loop_header_branch
      %25 = sbr.rel (%p23) target = $region8
    $region5: #{tpu_custom_call.1} parent=1 // loop_body
      %s27 = sadd.s32 %s20, %s22
      %s28 = sld [smem:[#allocation7 + %s27]]
      %s29 = sld [smem:[#allocation8 + %s27]]
      %s30 = scalar_lea.vmem %s2, %s28
      %s31 = scalar_lea.vmem [#allocation2], %s22
      %p33 = scmp.lt.u32.totalorder 1, 8
      %p34 = pneg %p33
      // Predicated region
      $region9: #{tpu_custom_call.1} parent=5 // pred_check
        _
      $region10: #{tpu_custom_call.1} parent=5 // pred_check_branch
        %36 = sbr.rel (%p33) target = $region12
      $region11: #{tpu_custom_call.1} parent=5 // pred_region
        %s51 = sand.u32 1, 7
        %p52 = scmp.eq.s32.totalorder %s51, 0
        %p53 = pneg %p52
        // Predicated region
        $region24: #{tpu_custom_call.1} parent=11 // pred_check
          _
        $region25: #{tpu_custom_call.1} parent=11 // pred_check_branch
          %55 = sbr.rel (%p52) target = $region27
        $region26: #{tpu_custom_call.1} parent=11 // pred_region
          %s56 = sand.u32 1, 7
          %s57 = ssub.s32 1, %s56
          %s58 = scalar_lea.vmem %s30, %s57
          %s59 = ssub.s32 1, %s56
          %s60 = scalar_lea.vmem %s31, %s59 [#allocation2]
          %s61 = sshllo.u32 0, %s56
          loop: start=0, step=1, limit=1
          $region28: #{tpu_custom_call.1} parent=26 // loop_pre_header
            _
          $region29: #{tpu_custom_call.1} parent=26 // loop_header
            %s63 = sphi 0, %s67
            %p64 = scmp.ge.s32.totalorder %s63, 1
            %s68 = sphi %s58, %s58
            %s69 = sphi %s60, %s60
          $region30: #{tpu_custom_call.1} parent=26 // loop_header_branch
            %66 = sbr.rel (%p64) target = $region34
          $region31: #{tpu_custom_call.1} parent=26 // loop_body
            %v70 = vld [vmem:[%s68] sm:%s61]
            %71 = vst [vmem:[%s69] sm:%s61] %v70
          $region32: #{tpu_custom_call.1} parent=26 // loop_footer
            %s67 = sadd.s32 1, %s63
          $region33: #{tpu_custom_call.1} parent=26 // loop_footer_branch
            %62 = sbr.rel target = $region29
          $region34: #{tpu_custom_call.1} parent=26 // loop_exit
            _
        $region27: #{tpu_custom_call.1} parent=11 // pred_fallthru
          _
      $region12: #{tpu_custom_call.1} parent=5 // pred_fallthru
        _
      // Predicated region
      $region13: #{tpu_custom_call.1} parent=5 // pred_check
        %p37 = pneg %p33
      $region14: #{tpu_custom_call.1} parent=5 // pred_check_branch
        %39 = sbr.rel (%p37) target = $region16
      $region15: #{tpu_custom_call.1} parent=5 // pred_region
        %s40 = sshllo.u32 0, 1
        loop: start=0, step=1, limit=1
        $region17: #{tpu_custom_call.1} parent=15 // loop_pre_header
          _
        $region18: #{tpu_custom_call.1} parent=15 // loop_header
          %s42 = sphi 0, %s46
          %p43 = scmp.ge.s32.totalorder %s42, 1
          %s47 = sphi %s30, %s30
          %s48 = sphi %s31, %s31
        $region19: #{tpu_custom_call.1} parent=15 // loop_header_branch
          %45 = sbr.rel (%p43) target = $region23
        $region20: #{tpu_custom_call.1} parent=15 // loop_body
          %v49 = vld [vmem:[%s47] sm:%s40]
          %50 = vst [vmem:[%s48] sm:%s40] %v49
        $region21: #{tpu_custom_call.1} parent=15 // loop_footer
          %s46 = sadd.s32 1, %s42
        $region22: #{tpu_custom_call.1} parent=15 // loop_footer_branch
          %41 = sbr.rel target = $region18
        $region23: #{tpu_custom_call.1} parent=15 // loop_exit
          _
      $region16: #{tpu_custom_call.1} parent=5 // pred_fallthru
        _
      // Predicated region
      $region35: #{tpu_custom_call.1} parent=5 // pred_check
        _
      $region36: #{tpu_custom_call.1} parent=5 // pred_check_branch
        %74 = sbr.rel (0) target = $region38
      $region37: #{tpu_custom_call.1} parent=5 // pred_region
        %75 = vsyncadd [#allocation5], 16
      $region38: #{tpu_custom_call.1} parent=5 // pred_fallthru
        _
      %s76 = scalar_lea.vmem %s3, %s29
      %s77 = scalar_lea.vmem [#allocation3], %s22
      %s78 = scalar_lea.sflag [#allocation5], 1
      %p80 = scmp.lt.u32.totalorder 1, 8
      %p81 = pneg %p80
      // Predicated region
      $region39: #{tpu_custom_call.1} parent=5 // pred_check
        _
      $region40: #{tpu_custom_call.1} parent=5 // pred_check_branch
        %83 = sbr.rel (%p80) target = $region42
      $region41: #{tpu_custom_call.1} parent=5 // pred_region
        %s98 = sand.u32 1, 7
        %p99 = scmp.eq.s32.totalorder %s98, 0
        %p100 = pneg %p99
        // Predicated region
        $region54: #{tpu_custom_call.1} parent=41 // pred_check
          _
        $region55: #{tpu_custom_call.1} parent=41 // pred_check_branch
          %102 = sbr.rel (%p99) target = $region57
        $region56: #{tpu_custom_call.1} parent=41 // pred_region
          %s103 = sand.u32 1, 7
          %s104 = ssub.s32 1, %s103
          %s105 = scalar_lea.vmem %s76, %s104
          %s106 = ssub.s32 1, %s103
          %s107 = scalar_lea.vmem %s77, %s106 [#allocation3]
          %s108 = sshllo.u32 0, %s103
          loop: start=0, step=1, limit=1
          $region58: #{tpu_custom_call.1} parent=56 // loop_pre_header
            _
          $region59: #{tpu_custom_call.1} parent=56 // loop_header
            %s110 = sphi 0, %s114
            %p111 = scmp.ge.s32.totalorder %s110, 1
            %s115 = sphi %s105, %s105
            %s116 = sphi %s107, %s107
          $region60: #{tpu_custom_call.1} parent=56 // loop_header_branch
            %113 = sbr.rel (%p111) target = $region64
          $region61: #{tpu_custom_call.1} parent=56 // loop_body
            %v117 = vld [vmem:[%s115] sm:%s108]
            %118 = vst [vmem:[%s116] sm:%s108] %v117
          $region62: #{tpu_custom_call.1} parent=56 // loop_footer
            %s114 = sadd.s32 1, %s110
          $region63: #{tpu_custom_call.1} parent=56 // loop_footer_branch
            %109 = sbr.rel target = $region59
          $region64: #{tpu_custom_call.1} parent=56 // loop_exit
            _
        $region57: #{tpu_custom_call.1} parent=41 // pred_fallthru
          _
      $region42: #{tpu_custom_call.1} parent=5 // pred_fallthru
        _
      // Predicated region
      $region43: #{tpu_custom_call.1} parent=5 // pred_check
        %p84 = pneg %p80
      $region44: #{tpu_custom_call.1} parent=5 // pred_check_branch
        %86 = sbr.rel (%p84) target = $region46
      $region45: #{tpu_custom_call.1} parent=5 // pred_region
        %s87 = sshllo.u32 0, 1
        loop: start=0, step=1, limit=1
        $region47: #{tpu_custom_call.1} parent=45 // loop_pre_header
          _
        $region48: #{tpu_custom_call.1} parent=45 // loop_header
          %s89 = sphi 0, %s93
          %p90 = scmp.ge.s32.totalorder %s89, 1
          %s94 = sphi %s76, %s76
          %s95 = sphi %s77, %s77
        $region49: #{tpu_custom_call.1} parent=45 // loop_header_branch
          %92 = sbr.rel (%p90) target = $region53
        $region50: #{tpu_custom_call.1} parent=45 // loop_body
          %v96 = vld [vmem:[%s94] sm:%s87]
          %97 = vst [vmem:[%s95] sm:%s87] %v96
        $region51: #{tpu_custom_call.1} parent=45 // loop_footer
          %s93 = sadd.s32 1, %s89
        $region52: #{tpu_custom_call.1} parent=45 // loop_footer_branch
          %88 = sbr.rel target = $region48
        $region53: #{tpu_custom_call.1} parent=45 // loop_exit
          _
      $region46: #{tpu_custom_call.1} parent=5 // pred_fallthru
        _
      // Predicated region
      $region65: #{tpu_custom_call.1} parent=5 // pred_check
        _
      $region66: #{tpu_custom_call.1} parent=5 // pred_check_branch
        %121 = sbr.rel (0) target = $region68
      $region67: #{tpu_custom_call.1} parent=5 // pred_region
        %122 = vsyncadd %s78, 16
      $region68: #{tpu_custom_call.1} parent=5 // pred_fallthru
        _
      %s123 = scalar_lea.vmem %s3, %s28
      %s124 = scalar_lea.vmem [#allocation4], %s22
      %s125 = scalar_lea.sflag [#allocation5], 2
      %p127 = scmp.lt.u32.totalorder 1, 8
      %p128 = pneg %p127
      // Predicated region
      $region69: #{tpu_custom_call.1} parent=5 // pred_check
        _
      $region70: #{tpu_custom_call.1} parent=5 // pred_check_branch
        %130 = sbr.rel (%p127) target = $region72
      $region71: #{tpu_custom_call.1} parent=5 // pred_region
        %s145 = sand.u32 1, 7
        %p146 = scmp.eq.s32.totalorder %s145, 0
        %p147 = pneg %p146
        // Predicated region
        $region84: #{tpu_custom_call.1} parent=71 // pred_check
          _
        $region85: #{tpu_custom_call.1} parent=71 // pred_check_branch
          %149 = sbr.rel (%p146) target = $region87
        $region86: #{tpu_custom_call.1} parent=71 // pred_region
          %s150 = sand.u32 1, 7
          %s151 = ssub.s32 1, %s150
          %s152 = scalar_lea.vmem %s123, %s151
          %s153 = ssub.s32 1, %s150
          %s154 = scalar_lea.vmem %s124, %s153 [#allocation4]
          %s155 = sshllo.u32 0, %s150
          loop: start=0, step=1, limit=1
          $region88: #{tpu_custom_call.1} parent=86 // loop_pre_header
            _
          $region89: #{tpu_custom_call.1} parent=86 // loop_header
            %s157 = sphi 0, %s161
            %p158 = scmp.ge.s32.totalorder %s157, 1
            %s162 = sphi %s152, %s152
            %s163 = sphi %s154, %s154
          $region90: #{tpu_custom_call.1} parent=86 // loop_header_branch
            %160 = sbr.rel (%p158) target = $region94
          $region91: #{tpu_custom_call.1} parent=86 // loop_body
            %v164 = vld [vmem:[%s162] sm:%s155]
            %165 = vst [vmem:[%s163] sm:%s155] %v164
          $region92: #{tpu_custom_call.1} parent=86 // loop_footer
            %s161 = sadd.s32 1, %s157
          $region93: #{tpu_custom_call.1} parent=86 // loop_footer_branch
            %156 = sbr.rel target = $region89
          $region94: #{tpu_custom_call.1} parent=86 // loop_exit
            _
        $region87: #{tpu_custom_call.1} parent=71 // pred_fallthru
          _
      $region72: #{tpu_custom_call.1} parent=5 // pred_fallthru
        _
      // Predicated region
      $region73: #{tpu_custom_call.1} parent=5 // pred_check
        %p131 = pneg %p127
      $region74: #{tpu_custom_call.1} parent=5 // pred_check_branch
        %133 = sbr.rel (%p131) target = $region76
      $region75: #{tpu_custom_call.1} parent=5 // pred_region
        %s134 = sshllo.u32 0, 1
        loop: start=0, step=1, limit=1
        $region77: #{tpu_custom_call.1} parent=75 // loop_pre_header
          _
        $region78: #{tpu_custom_call.1} parent=75 // loop_header
          %s136 = sphi 0, %s140
          %p137 = scmp.ge.s32.totalorder %s136, 1
          %s141 = sphi %s123, %s123
          %s142 = sphi %s124, %s124
        $region79: #{tpu_custom_call.1} parent=75 // loop_header_branch
          %139 = sbr.rel (%p137) target = $region83
        $region80: #{tpu_custom_call.1} parent=75 // loop_body
          %v143 = vld [vmem:[%s141] sm:%s134]
          %144 = vst [vmem:[%s142] sm:%s134] %v143
        $region81: #{tpu_custom_call.1} parent=75 // loop_footer
          %s140 = sadd.s32 1, %s136
        $region82: #{tpu_custom_call.1} parent=75 // loop_footer_branch
          %135 = sbr.rel target = $region78
        $region83: #{tpu_custom_call.1} parent=75 // loop_exit
          _
      $region76: #{tpu_custom_call.1} parent=5 // pred_fallthru
        _
      // Predicated region
      $region95: #{tpu_custom_call.1} parent=5 // pred_check
        _
      $region96: #{tpu_custom_call.1} parent=5 // pred_check_branch
        %168 = sbr.rel (0) target = $region98
      $region97: #{tpu_custom_call.1} parent=5 // pred_region
        %169 = vsyncadd %s125, 16
      $region98: #{tpu_custom_call.1} parent=5 // pred_fallthru
        _
    $region6: #{tpu_custom_call.1} parent=1 // loop_footer
      %s26 = sadd.s32 1, %s22
    $region7: #{tpu_custom_call.1} parent=1 // loop_footer_branch
      %21 = sbr.rel target = $region3
    $region8: #{tpu_custom_call.1} parent=1 // loop_exit
      _
    loop: start=0, step=1, limit=128
    $region99: #{tpu_custom_call.1} parent=1 // loop_pre_header
      _
    $region100: #{tpu_custom_call.1} parent=1 // loop_header
      %s171 = sphi 0, %s175
      %p172 = scmp.ge.s32.totalorder %s171, 128
    $region101: #{tpu_custom_call.1} parent=1 // loop_header_branch
      %174 = sbr.rel (%p172) target = $region105
    $region102: #{tpu_custom_call.1} parent=1 // loop_body
      %177 = dma.done [#allocation5], 16
      %s178 = scalar_lea.sflag [#allocation5], 1
      %180 = dma.done %s178, 16
      %s181 = scalar_lea.sflag [#allocation5], 2
      %183 = dma.done %s181, 16
    $region103: #{tpu_custom_call.1} parent=1 // loop_footer
      %s175 = sadd.s32 1, %s171
    $region104: #{tpu_custom_call.1} parent=1 // loop_footer_branch
      %170 = sbr.rel target = $region100
    $region105: #{tpu_custom_call.1} parent=1 // loop_exit
      _
    %v184 = vld [vmem:[#allocation2] sm:$0xff]
    %v185 = vld [vmem:[#allocation2 + $0x8] sm:$0xff]
    %v186 = vld [vmem:[#allocation2 + $0x10] sm:$0xff]
    %v187 = vld [vmem:[#allocation2 + $0x18] sm:$0xff]
    %v188 = vld [vmem:[#allocation2 + $0x20] sm:$0xff]
    %v189 = vld [vmem:[#allocation2 + $0x28] sm:$0xff]
    %v190 = vld [vmem:[#allocation2 + $0x30] sm:$0xff]
    %v191 = vld [vmem:[#allocation2 + $0x38] sm:$0xff]
    %v192 = vld [vmem:[#allocation2 + $0x40] sm:$0xff]
    %v193 = vld [vmem:[#allocation2 + $0x48] sm:$0xff]
    %v194 = vld [vmem:[#allocation2 + $0x50] sm:$0xff]
    %v195 = vld [vmem:[#allocation2 + $0x58] sm:$0xff]
    %v196 = vld [vmem:[#allocation2 + $0x60] sm:$0xff]
    %v197 = vld [vmem:[#allocation2 + $0x68] sm:$0xff]
    %v198 = vld [vmem:[#allocation2 + $0x70] sm:$0xff]
    %v199 = vld [vmem:[#allocation2 + $0x78] sm:$0xff]
    %v200 = vld [vmem:[#allocation3] sm:$0xff]
    %v201 = vld [vmem:[#allocation3 + $0x8] sm:$0xff]
    %v202 = vld [vmem:[#allocation3 + $0x10] sm:$0xff]
    %v203 = vld [vmem:[#allocation3 + $0x18] sm:$0xff]
    %v204 = vld [vmem:[#allocation3 + $0x20] sm:$0xff]
    %v205 = vld [vmem:[#allocation3 + $0x28] sm:$0xff]
    %v206 = vld [vmem:[#allocation3 + $0x30] sm:$0xff]
    %v207 = vld [vmem:[#allocation3 + $0x38] sm:$0xff]
    %v208 = vld [vmem:[#allocation3 + $0x40] sm:$0xff]
    %v209 = vld [vmem:[#allocation3 + $0x48] sm:$0xff]
    %v210 = vld [vmem:[#allocation3 + $0x50] sm:$0xff]
    %v211 = vld [vmem:[#allocation3 + $0x58] sm:$0xff]
    %v212 = vld [vmem:[#allocation3 + $0x60] sm:$0xff]
    %v213 = vld [vmem:[#allocation3 + $0x68] sm:$0xff]
    %v214 = vld [vmem:[#allocation3 + $0x70] sm:$0xff]
    %v215 = vld [vmem:[#allocation3 + $0x78] sm:$0xff]
    %v216 = vld [vmem:[#allocation4] sm:$0xff]
    %v217 = vld [vmem:[#allocation4 + $0x8] sm:$0xff]
    %v218 = vld [vmem:[#allocation4 + $0x10] sm:$0xff]
    %v219 = vld [vmem:[#allocation4 + $0x18] sm:$0xff]
    %v220 = vld [vmem:[#allocation4 + $0x20] sm:$0xff]
    %v221 = vld [vmem:[#allocation4 + $0x28] sm:$0xff]
    %v222 = vld [vmem:[#allocation4 + $0x30] sm:$0xff]
    %v223 = vld [vmem:[#allocation4 + $0x38] sm:$0xff]
    %v224 = vld [vmem:[#allocation4 + $0x40] sm:$0xff]
    %v225 = vld [vmem:[#allocation4 + $0x48] sm:$0xff]
    %v226 = vld [vmem:[#allocation4 + $0x50] sm:$0xff]
    %v227 = vld [vmem:[#allocation4 + $0x58] sm:$0xff]
    %v228 = vld [vmem:[#allocation4 + $0x60] sm:$0xff]
    %v229 = vld [vmem:[#allocation4 + $0x68] sm:$0xff]
    %v230 = vld [vmem:[#allocation4 + $0x70] sm:$0xff]
    %v231 = vld [vmem:[#allocation4 + $0x78] sm:$0xff]
    %v232 = vmul.f32 %v184, %v200
    %v233 = vmul.f32 %v185, %v201
    %v234 = vmul.f32 %v186, %v202
    %v235 = vmul.f32 %v187, %v203
    %v236 = vmul.f32 %v188, %v204
    %v237 = vmul.f32 %v189, %v205
    %v238 = vmul.f32 %v190, %v206
    %v239 = vmul.f32 %v191, %v207
    %v240 = vmul.f32 %v192, %v208
    %v241 = vmul.f32 %v193, %v209
    %v242 = vmul.f32 %v194, %v210
    %v243 = vmul.f32 %v195, %v211
    %v244 = vmul.f32 %v196, %v212
    %v245 = vmul.f32 %v197, %v213
    %v246 = vmul.f32 %v198, %v214
    %v247 = vmul.f32 %v199, %v215
    %vm248 = vcmask 261120
    %v249 = vsel %vm248, %v232, 0.0
    %250 = vadd.xlane.f32.xlu0 %v249
    %v251 = vpop.xlane.xlu0 %250
    %v252 = vsel %vm248, %v233, 0.0
    %253 = vadd.xlane.f32.xlu0 %v252
    %v254 = vpop.xlane.xlu0 %253
    %v255 = vsel %vm248, %v234, 0.0
    %256 = vadd.xlane.f32.xlu0 %v255
    %v257 = vpop.xlane.xlu0 %256
    %v258 = vsel %vm248, %v235, 0.0
    %259 = vadd.xlane.f32.xlu0 %v258
    %v260 = vpop.xlane.xlu0 %259
    %v261 = vsel %vm248, %v236, 0.0
    %262 = vadd.xlane.f32.xlu0 %v261
    %v263 = vpop.xlane.xlu0 %262
    %v264 = vsel %vm248, %v237, 0.0
    %265 = vadd.xlane.f32.xlu0 %v264
    %v266 = vpop.xlane.xlu0 %265
    %v267 = vsel %vm248, %v238, 0.0
    %268 = vadd.xlane.f32.xlu0 %v267
    %v269 = vpop.xlane.xlu0 %268
    %v270 = vsel %vm248, %v239, 0.0
    %271 = vadd.xlane.f32.xlu0 %v270
    %v272 = vpop.xlane.xlu0 %271
    %v273 = vsel %vm248, %v240, 0.0
    %274 = vadd.xlane.f32.xlu0 %v273
    %v275 = vpop.xlane.xlu0 %274
    %v276 = vsel %vm248, %v241, 0.0
    %277 = vadd.xlane.f32.xlu0 %v276
    %v278 = vpop.xlane.xlu0 %277
    %v279 = vsel %vm248, %v242, 0.0
    %280 = vadd.xlane.f32.xlu0 %v279
    %v281 = vpop.xlane.xlu0 %280
    %v282 = vsel %vm248, %v243, 0.0
    %283 = vadd.xlane.f32.xlu0 %v282
    %v284 = vpop.xlane.xlu0 %283
    %v285 = vsel %vm248, %v244, 0.0
    %286 = vadd.xlane.f32.xlu0 %v285
    %v287 = vpop.xlane.xlu0 %286
    %v288 = vsel %vm248, %v245, 0.0
    %289 = vadd.xlane.f32.xlu0 %v288
    %v290 = vpop.xlane.xlu0 %289
    %v291 = vsel %vm248, %v246, 0.0
    %292 = vadd.xlane.f32.xlu0 %v291
    %v293 = vpop.xlane.xlu0 %292
    %v294 = vsel %vm248, %v247, 0.0
    %295 = vadd.xlane.f32.xlu0 %v294
    %v296 = vpop.xlane.xlu0 %295
    %v297 = vmul.f32 %v184, %v216
    %v298 = vmul.f32 %v185, %v217
    %v299 = vmul.f32 %v186, %v218
    %v300 = vmul.f32 %v187, %v219
    %v301 = vmul.f32 %v188, %v220
    %v302 = vmul.f32 %v189, %v221
    %v303 = vmul.f32 %v190, %v222
    %v304 = vmul.f32 %v191, %v223
    %v305 = vmul.f32 %v192, %v224
    %v306 = vmul.f32 %v193, %v225
    %v307 = vmul.f32 %v194, %v226
    %v308 = vmul.f32 %v195, %v227
    %v309 = vmul.f32 %v196, %v228
    %v310 = vmul.f32 %v197, %v229
    %v311 = vmul.f32 %v198, %v230
    %v312 = vmul.f32 %v199, %v231
    %v313 = vsel %vm248, %v297, 0.0
    %314 = vadd.xlane.f32.xlu0 %v313
    %v315 = vpop.xlane.xlu0 %314
    %v316 = vsel %vm248, %v298, 0.0
    %317 = vadd.xlane.f32.xlu0 %v316
    %v318 = vpop.xlane.xlu0 %317
    %v319 = vsel %vm248, %v299, 0.0
    %320 = vadd.xlane.f32.xlu0 %v319
    %v321 = vpop.xlane.xlu0 %320
    %v322 = vsel %vm248, %v300, 0.0
    %323 = vadd.xlane.f32.xlu0 %v322
    %v324 = vpop.xlane.xlu0 %323
    %v325 = vsel %vm248, %v301, 0.0
    %326 = vadd.xlane.f32.xlu0 %v325
    %v327 = vpop.xlane.xlu0 %326
    %v328 = vsel %vm248, %v302, 0.0
    %329 = vadd.xlane.f32.xlu0 %v328
    %v330 = vpop.xlane.xlu0 %329
    %v331 = vsel %vm248, %v303, 0.0
    %332 = vadd.xlane.f32.xlu0 %v331
    %v333 = vpop.xlane.xlu0 %332
    %v334 = vsel %vm248, %v304, 0.0
    %335 = vadd.xlane.f32.xlu0 %v334
    %v336 = vpop.xlane.xlu0 %335
    %v337 = vsel %vm248, %v305, 0.0
    %338 = vadd.xlane.f32.xlu0 %v337
    %v339 = vpop.xlane.xlu0 %338
    %v340 = vsel %vm248, %v306, 0.0
    %341 = vadd.xlane.f32.xlu0 %v340
    %v342 = vpop.xlane.xlu0 %341
    %v343 = vsel %vm248, %v307, 0.0
    %344 = vadd.xlane.f32.xlu0 %v343
    %v345 = vpop.xlane.xlu0 %344
    %v346 = vsel %vm248, %v308, 0.0
    %347 = vadd.xlane.f32.xlu0 %v346
    %v348 = vpop.xlane.xlu0 %347
    %v349 = vsel %vm248, %v309, 0.0
    %350 = vadd.xlane.f32.xlu0 %v349
    %v351 = vpop.xlane.xlu0 %350
    %v352 = vsel %vm248, %v310, 0.0
    %353 = vadd.xlane.f32.xlu0 %v352
    %v354 = vpop.xlane.xlu0 %353
    %v355 = vsel %vm248, %v311, 0.0
    %356 = vadd.xlane.f32.xlu0 %v355
    %v357 = vpop.xlane.xlu0 %356
    %v358 = vsel %vm248, %v312, 0.0
    %359 = vadd.xlane.f32.xlu0 %v358
    %v360 = vpop.xlane.xlu0 %359
    %v361 = vmul.f32 %v184, %v184
    %v362 = vmul.f32 %v185, %v185
    %v363 = vmul.f32 %v186, %v186
    %v364 = vmul.f32 %v187, %v187
    %v365 = vmul.f32 %v188, %v188
    %v366 = vmul.f32 %v189, %v189
    %v367 = vmul.f32 %v190, %v190
    %v368 = vmul.f32 %v191, %v191
    %v369 = vmul.f32 %v192, %v192
    %v370 = vmul.f32 %v193, %v193
    %v371 = vmul.f32 %v194, %v194
    %v372 = vmul.f32 %v195, %v195
    %v373 = vmul.f32 %v196, %v196
    %v374 = vmul.f32 %v197, %v197
    %v375 = vmul.f32 %v198, %v198
    %v376 = vmul.f32 %v199, %v199
    %v377 = vsel %vm248, %v361, 0.0
    %378 = vadd.xlane.f32.xlu0 %v377
    %v379 = vpop.xlane.xlu0 %378
    %v380 = vsel %vm248, %v362, 0.0
    %381 = vadd.xlane.f32.xlu0 %v380
    %v382 = vpop.xlane.xlu0 %381
    %v383 = vsel %vm248, %v363, 0.0
    %384 = vadd.xlane.f32.xlu0 %v383
    %v385 = vpop.xlane.xlu0 %384
    %v386 = vsel %vm248, %v364, 0.0
    %387 = vadd.xlane.f32.xlu0 %v386
    %v388 = vpop.xlane.xlu0 %387
    %v389 = vsel %vm248, %v365, 0.0
    %390 = vadd.xlane.f32.xlu0 %v389
    %v391 = vpop.xlane.xlu0 %390
    %v392 = vsel %vm248, %v366, 0.0
    %393 = vadd.xlane.f32.xlu0 %v392
    %v394 = vpop.xlane.xlu0 %393
    %v395 = vsel %vm248, %v367, 0.0
    %396 = vadd.xlane.f32.xlu0 %v395
    %v397 = vpop.xlane.xlu0 %396
    %v398 = vsel %vm248, %v368, 0.0
    %399 = vadd.xlane.f32.xlu0 %v398
    %v400 = vpop.xlane.xlu0 %399
    %v401 = vsel %vm248, %v369, 0.0
    %402 = vadd.xlane.f32.xlu0 %v401
    %v403 = vpop.xlane.xlu0 %402
    %v404 = vsel %vm248, %v370, 0.0
    %405 = vadd.xlane.f32.xlu0 %v404
    %v406 = vpop.xlane.xlu0 %405
    %v407 = vsel %vm248, %v371, 0.0
    %408 = vadd.xlane.f32.xlu0 %v407
    %v409 = vpop.xlane.xlu0 %408
    %v410 = vsel %vm248, %v372, 0.0
    %411 = vadd.xlane.f32.xlu0 %v410
    %v412 = vpop.xlane.xlu0 %411
    %v413 = vsel %vm248, %v373, 0.0
    %414 = vadd.xlane.f32.xlu0 %v413
    %v415 = vpop.xlane.xlu0 %414
    %v416 = vsel %vm248, %v374, 0.0
    %417 = vadd.xlane.f32.xlu0 %v416
    %v418 = vpop.xlane.xlu0 %417
    %v419 = vsel %vm248, %v375, 0.0
    %420 = vadd.xlane.f32.xlu0 %v419
    %v421 = vpop.xlane.xlu0 %420
    %v422 = vsel %vm248, %v376, 0.0
    %423 = vadd.xlane.f32.xlu0 %v422
    %v424 = vpop.xlane.xlu0 %423
    %v425 = vrsqrt.pop %v379
    %v426 = vmul.f32 %v379, %v425
    %vm427 = vcmp.eq.f32.partialorder %v379, inf
    %v428 = vsel %vm427, %v379, %v426
    %vm429 = vcmp.eq.f32.partialorder %v379, 0.0
    %v430 = vand.u32 %v379, 2147483648
    %v431 = vsel %vm429, %v430, %v428
    %v432 = vrsqrt.pop %v382
    %v433 = vmul.f32 %v382, %v432
    %vm434 = vcmp.eq.f32.partialorder %v382, inf
    %v435 = vsel %vm434, %v382, %v433
    %vm436 = vcmp.eq.f32.partialorder %v382, 0.0
    %v437 = vand.u32 %v382, 2147483648
    %v438 = vsel %vm436, %v437, %v435
    %v439 = vrsqrt.pop %v385
    %v440 = vmul.f32 %v385, %v439
    %vm441 = vcmp.eq.f32.partialorder %v385, inf
    %v442 = vsel %vm441, %v385, %v440
    %vm443 = vcmp.eq.f32.partialorder %v385, 0.0
    %v444 = vand.u32 %v385, 2147483648
    %v445 = vsel %vm443, %v444, %v442
    %v446 = vrsqrt.pop %v388
    %v447 = vmul.f32 %v388, %v446
    %vm448 = vcmp.eq.f32.partialorder %v388, inf
    %v449 = vsel %vm448, %v388, %v447
    %vm450 = vcmp.eq.f32.partialorder %v388, 0.0
    %v451 = vand.u32 %v388, 2147483648
    %v452 = vsel %vm450, %v451, %v449
    %v453 = vrsqrt.pop %v391
    %v454 = vmul.f32 %v391, %v453
    %vm455 = vcmp.eq.f32.partialorder %v391, inf
    %v456 = vsel %vm455, %v391, %v454
    %vm457 = vcmp.eq.f32.partialorder %v391, 0.0
    %v458 = vand.u32 %v391, 2147483648
    %v459 = vsel %vm457, %v458, %v456
    %v460 = vrsqrt.pop %v394
    %v461 = vmul.f32 %v394, %v460
    %vm462 = vcmp.eq.f32.partialorder %v394, inf
    %v463 = vsel %vm462, %v394, %v461
    %vm464 = vcmp.eq.f32.partialorder %v394, 0.0
    %v465 = vand.u32 %v394, 2147483648
    %v466 = vsel %vm464, %v465, %v463
    %v467 = vrsqrt.pop %v397
    %v468 = vmul.f32 %v397, %v467
    %vm469 = vcmp.eq.f32.partialorder %v397, inf
    %v470 = vsel %vm469, %v397, %v468
    %vm471 = vcmp.eq.f32.partialorder %v397, 0.0
    %v472 = vand.u32 %v397, 2147483648
    %v473 = vsel %vm471, %v472, %v470
    %v474 = vrsqrt.pop %v400
    %v475 = vmul.f32 %v400, %v474
    %vm476 = vcmp.eq.f32.partialorder %v400, inf
    %v477 = vsel %vm476, %v400, %v475
    %vm478 = vcmp.eq.f32.partialorder %v400, 0.0
    %v479 = vand.u32 %v400, 2147483648
    %v480 = vsel %vm478, %v479, %v477
    %v481 = vrsqrt.pop %v403
    %v482 = vmul.f32 %v403, %v481
    %vm483 = vcmp.eq.f32.partialorder %v403, inf
    %v484 = vsel %vm483, %v403, %v482
    %vm485 = vcmp.eq.f32.partialorder %v403, 0.0
    %v486 = vand.u32 %v403, 2147483648
    %v487 = vsel %vm485, %v486, %v484
    %v488 = vrsqrt.pop %v406
    %v489 = vmul.f32 %v406, %v488
    %vm490 = vcmp.eq.f32.partialorder %v406, inf
    %v491 = vsel %vm490, %v406, %v489
    %vm492 = vcmp.eq.f32.partialorder %v406, 0.0
    %v493 = vand.u32 %v406, 2147483648
    %v494 = vsel %vm492, %v493, %v491
    %v495 = vrsqrt.pop %v409
    %v496 = vmul.f32 %v409, %v495
    %vm497 = vcmp.eq.f32.partialorder %v409, inf
    %v498 = vsel %vm497, %v409, %v496
    %vm499 = vcmp.eq.f32.partialorder %v409, 0.0
    %v500 = vand.u32 %v409, 2147483648
    %v501 = vsel %vm499, %v500, %v498
    %v502 = vrsqrt.pop %v412
    %v503 = vmul.f32 %v412, %v502
    %vm504 = vcmp.eq.f32.partialorder %v412, inf
    %v505 = vsel %vm504, %v412, %v503
    %vm506 = vcmp.eq.f32.partialorder %v412, 0.0
    %v507 = vand.u32 %v412, 2147483648
    %v508 = vsel %vm506, %v507, %v505
    %v509 = vrsqrt.pop %v415
    %v510 = vmul.f32 %v415, %v509
    %vm511 = vcmp.eq.f32.partialorder %v415, inf
    %v512 = vsel %vm511, %v415, %v510
    %vm513 = vcmp.eq.f32.partialorder %v415, 0.0
    %v514 = vand.u32 %v415, 2147483648
    %v515 = vsel %vm513, %v514, %v512
    %v516 = vrsqrt.pop %v418
    %v517 = vmul.f32 %v418, %v516
    %vm518 = vcmp.eq.f32.partialorder %v418, inf
    %v519 = vsel %vm518, %v418, %v517
    %vm520 = vcmp.eq.f32.partialorder %v418, 0.0
    %v521 = vand.u32 %v418, 2147483648
    %v522 = vsel %vm520, %v521, %v519
    %v523 = vrsqrt.pop %v421
    %v524 = vmul.f32 %v421, %v523
    %vm525 = vcmp.eq.f32.partialorder %v421, inf
    %v526 = vsel %vm525, %v421, %v524
    %vm527 = vcmp.eq.f32.partialorder %v421, 0.0
    %v528 = vand.u32 %v421, 2147483648
    %v529 = vsel %vm527, %v528, %v526
    %v530 = vrsqrt.pop %v424
    %v531 = vmul.f32 %v424, %v530
    %vm532 = vcmp.eq.f32.partialorder %v424, inf
    %v533 = vsel %vm532, %v424, %v531
    %vm534 = vcmp.eq.f32.partialorder %v424, 0.0
    %v535 = vand.u32 %v424, 2147483648
    %v536 = vsel %vm534, %v535, %v533
    %v537 = vmul.f32 %v216, %v216
    %v538 = vmul.f32 %v217, %v217
    %v539 = vmul.f32 %v218, %v218
    %v540 = vmul.f32 %v219, %v219
    %v541 = vmul.f32 %v220, %v220
    %v542 = vmul.f32 %v221, %v221
    %v543 = vmul.f32 %v222, %v222
    %v544 = vmul.f32 %v223, %v223
    %v545 = vmul.f32 %v224, %v224
    %v546 = vmul.f32 %v225, %v225
    %v547 = vmul.f32 %v226, %v226
    %v548 = vmul.f32 %v227, %v227
    %v549 = vmul.f32 %v228, %v228
    %v550 = vmul.f32 %v229, %v229
    %v551 = vmul.f32 %v230, %v230
    %v552 = vmul.f32 %v231, %v231
    %v553 = vsel %vm248, %v537, 0.0
    %554 = vadd.xlane.f32.xlu0 %v553
    %v555 = vpop.xlane.xlu0 %554
    %v556 = vsel %vm248, %v538, 0.0
    %557 = vadd.xlane.f32.xlu0 %v556
    %v558 = vpop.xlane.xlu0 %557
    %v559 = vsel %vm248, %v539, 0.0
    %560 = vadd.xlane.f32.xlu0 %v559
    %v561 = vpop.xlane.xlu0 %560
    %v562 = vsel %vm248, %v540, 0.0
    %563 = vadd.xlane.f32.xlu0 %v562
    %v564 = vpop.xlane.xlu0 %563
    %v565 = vsel %vm248, %v541, 0.0
    %566 = vadd.xlane.f32.xlu0 %v565
    %v567 = vpop.xlane.xlu0 %566
    %v568 = vsel %vm248, %v542, 0.0
    %569 = vadd.xlane.f32.xlu0 %v568
    %v570 = vpop.xlane.xlu0 %569
    %v571 = vsel %vm248, %v543, 0.0
    %572 = vadd.xlane.f32.xlu0 %v571
    %v573 = vpop.xlane.xlu0 %572
    %v574 = vsel %vm248, %v544, 0.0
    %575 = vadd.xlane.f32.xlu0 %v574
    %v576 = vpop.xlane.xlu0 %575
    %v577 = vsel %vm248, %v545, 0.0
    %578 = vadd.xlane.f32.xlu0 %v577
    %v579 = vpop.xlane.xlu0 %578
    %v580 = vsel %vm248, %v546, 0.0
    %581 = vadd.xlane.f32.xlu0 %v580
    %v582 = vpop.xlane.xlu0 %581
    %v583 = vsel %vm248, %v547, 0.0
    %584 = vadd.xlane.f32.xlu0 %v583
    %v585 = vpop.xlane.xlu0 %584
    %v586 = vsel %vm248, %v548, 0.0
    %587 = vadd.xlane.f32.xlu0 %v586
    %v588 = vpop.xlane.xlu0 %587
    %v589 = vsel %vm248, %v549, 0.0
    %590 = vadd.xlane.f32.xlu0 %v589
    %v591 = vpop.xlane.xlu0 %590
    %v592 = vsel %vm248, %v550, 0.0
    %593 = vadd.xlane.f32.xlu0 %v592
    %v594 = vpop.xlane.xlu0 %593
    %v595 = vsel %vm248, %v551, 0.0
    %596 = vadd.xlane.f32.xlu0 %v595
    %v597 = vpop.xlane.xlu0 %596
    %v598 = vsel %vm248, %v552, 0.0
    %599 = vadd.xlane.f32.xlu0 %v598
    %v600 = vpop.xlane.xlu0 %599
    %v601 = vrsqrt.pop %v555
    %v602 = vmul.f32 %v555, %v601
    %vm603 = vcmp.eq.f32.partialorder %v555, inf
    %v604 = vsel %vm603, %v555, %v602
    %vm605 = vcmp.eq.f32.partialorder %v555, 0.0
    %v606 = vand.u32 %v555, 2147483648
    %v607 = vsel %vm605, %v606, %v604
    %v608 = vrsqrt.pop %v558
    %v609 = vmul.f32 %v558, %v608
    %vm610 = vcmp.eq.f32.partialorder %v558, inf
    %v611 = vsel %vm610, %v558, %v609
    %vm612 = vcmp.eq.f32.partialorder %v558, 0.0
    %v613 = vand.u32 %v558, 2147483648
    %v614 = vsel %vm612, %v613, %v611
    %v615 = vrsqrt.pop %v561
    %v616 = vmul.f32 %v561, %v615
    %vm617 = vcmp.eq.f32.partialorder %v561, inf
    %v618 = vsel %vm617, %v561, %v616
    %vm619 = vcmp.eq.f32.partialorder %v561, 0.0
    %v620 = vand.u32 %v561, 2147483648
    %v621 = vsel %vm619, %v620, %v618
    %v622 = vrsqrt.pop %v564
    %v623 = vmul.f32 %v564, %v622
    %vm624 = vcmp.eq.f32.partialorder %v564, inf
    %v625 = vsel %vm624, %v564, %v623
    %vm626 = vcmp.eq.f32.partialorder %v564, 0.0
    %v627 = vand.u32 %v564, 2147483648
    %v628 = vsel %vm626, %v627, %v625
    %v629 = vrsqrt.pop %v567
    %v630 = vmul.f32 %v567, %v629
    %vm631 = vcmp.eq.f32.partialorder %v567, inf
    %v632 = vsel %vm631, %v567, %v630
    %vm633 = vcmp.eq.f32.partialorder %v567, 0.0
    %v634 = vand.u32 %v567, 2147483648
    %v635 = vsel %vm633, %v634, %v632
    %v636 = vrsqrt.pop %v570
    %v637 = vmul.f32 %v570, %v636
    %vm638 = vcmp.eq.f32.partialorder %v570, inf
    %v639 = vsel %vm638, %v570, %v637
    %vm640 = vcmp.eq.f32.partialorder %v570, 0.0
    %v641 = vand.u32 %v570, 2147483648
    %v642 = vsel %vm640, %v641, %v639
    %v643 = vrsqrt.pop %v573
    %v644 = vmul.f32 %v573, %v643
    %vm645 = vcmp.eq.f32.partialorder %v573, inf
    %v646 = vsel %vm645, %v573, %v644
    %vm647 = vcmp.eq.f32.partialorder %v573, 0.0
    %v648 = vand.u32 %v573, 2147483648
    %v649 = vsel %vm647, %v648, %v646
    %v650 = vrsqrt.pop %v576
    %v651 = vmul.f32 %v576, %v650
    %vm652 = vcmp.eq.f32.partialorder %v576, inf
    %v653 = vsel %vm652, %v576, %v651
    %vm654 = vcmp.eq.f32.partialorder %v576, 0.0
    %v655 = vand.u32 %v576, 2147483648
    %v656 = vsel %vm654, %v655, %v653
    %v657 = vrsqrt.pop %v579
    %v658 = vmul.f32 %v579, %v657
    %vm659 = vcmp.eq.f32.partialorder %v579, inf
    %v660 = vsel %vm659, %v579, %v658
    %vm661 = vcmp.eq.f32.partialorder %v579, 0.0
    %v662 = vand.u32 %v579, 2147483648
    %v663 = vsel %vm661, %v662, %v660
    %v664 = vrsqrt.pop %v582
    %v665 = vmul.f32 %v582, %v664
    %vm666 = vcmp.eq.f32.partialorder %v582, inf
    %v667 = vsel %vm666, %v582, %v665
    %vm668 = vcmp.eq.f32.partialorder %v582, 0.0
    %v669 = vand.u32 %v582, 2147483648
    %v670 = vsel %vm668, %v669, %v667
    %v671 = vrsqrt.pop %v585
    %v672 = vmul.f32 %v585, %v671
    %vm673 = vcmp.eq.f32.partialorder %v585, inf
    %v674 = vsel %vm673, %v585, %v672
    %vm675 = vcmp.eq.f32.partialorder %v585, 0.0
    %v676 = vand.u32 %v585, 2147483648
    %v677 = vsel %vm675, %v676, %v674
    %v678 = vrsqrt.pop %v588
    %v679 = vmul.f32 %v588, %v678
    %vm680 = vcmp.eq.f32.partialorder %v588, inf
    %v681 = vsel %vm680, %v588, %v679
    %vm682 = vcmp.eq.f32.partialorder %v588, 0.0
    %v683 = vand.u32 %v588, 2147483648
    %v684 = vsel %vm682, %v683, %v681
    %v685 = vrsqrt.pop %v591
    %v686 = vmul.f32 %v591, %v685
    %vm687 = vcmp.eq.f32.partialorder %v591, inf
    %v688 = vsel %vm687, %v591, %v686
    %vm689 = vcmp.eq.f32.partialorder %v591, 0.0
    %v690 = vand.u32 %v591, 2147483648
    %v691 = vsel %vm689, %v690, %v688
    %v692 = vrsqrt.pop %v594
    %v693 = vmul.f32 %v594, %v692
    %vm694 = vcmp.eq.f32.partialorder %v594, inf
    %v695 = vsel %vm694, %v594, %v693
    %vm696 = vcmp.eq.f32.partialorder %v594, 0.0
    %v697 = vand.u32 %v594, 2147483648
    %v698 = vsel %vm696, %v697, %v695
    %v699 = vrsqrt.pop %v597
    %v700 = vmul.f32 %v597, %v699
    %vm701 = vcmp.eq.f32.partialorder %v597, inf
    %v702 = vsel %vm701, %v597, %v700
    %vm703 = vcmp.eq.f32.partialorder %v597, 0.0
    %v704 = vand.u32 %v597, 2147483648
    %v705 = vsel %vm703, %v704, %v702
    %v706 = vrsqrt.pop %v600
    %v707 = vmul.f32 %v600, %v706
    %vm708 = vcmp.eq.f32.partialorder %v600, inf
    %v709 = vsel %vm708, %v600, %v707
    %vm710 = vcmp.eq.f32.partialorder %v600, 0.0
    %v711 = vand.u32 %v600, 2147483648
    %v712 = vsel %vm710, %v711, %v709
    %v713 = vsub.f32 %v431, %v607
    %v714 = vsub.f32 %v438, %v614
    %v715 = vsub.f32 %v445, %v621
    %v716 = vsub.f32 %v452, %v628
    %v717 = vsub.f32 %v459, %v635
    %v718 = vsub.f32 %v466, %v642
    %v719 = vsub.f32 %v473, %v649
    %v720 = vsub.f32 %v480, %v656
    %v721 = vsub.f32 %v487, %v663
    %v722 = vsub.f32 %v494, %v670
    %v723 = vsub.f32 %v501, %v677
    %v724 = vsub.f32 %v508, %v684
    %v725 = vsub.f32 %v515, %v691
    %v726 = vsub.f32 %v522, %v698
    %v727 = vsub.f32 %v529, %v705
    %v728 = vsub.f32 %v536, %v712
    %v745 = vlaneseq
    %v746 = vand.u32 %v745, 127
    %v747 = vlaneseq
    %v748 = vshrl.u32 %v747, 7
    %v749 = vsub.s32 %v746, %v748
    %v750 = vrot.slane %v251, %v749
    %v751 = vadd.s32 %v746, 4294967288
    %v752 = vlaneseq
    %v753 = vshrl.u32 %v752, 7
    %v754 = vsub.s32 %v751, %v753
    %v755 = vrot.slane %v254, %v754
    %vm756 = vcmask 130112
    %v757 = vsel %vm756, %v755, %v750
    %v758 = vadd.s32 %v746, 4294967280
    %v759 = vlaneseq
    %v760 = vshrl.u32 %v759, 7
    %v761 = vsub.s32 %v758, %v760
    %v762 = vrot.slane %v257, %v761
    %vm763 = vcmask 195712
    %v764 = vsel %vm763, %v762, %v757
    %v765 = vadd.s32 %v746, 4294967272
    %v766 = vlaneseq
    %v767 = vshrl.u32 %v766, 7
    %v768 = vsub.s32 %v765, %v767
    %v769 = vrot.slane %v260, %v768
    %vm770 = vcmask 261312
    %v771 = vsel %vm770, %v769, %v764
    %v772 = vadd.s32 %v746, 4294967264
    %v773 = vlaneseq
    %v774 = vshrl.u32 %v773, 7
    %v775 = vsub.s32 %v772, %v774
    %v776 = vrot.slane %v263, %v775
    %vm777 = vcmask 326912
    %v778 = vsel %vm777, %v776, %v771
    %v779 = vadd.s32 %v746, 4294967256
    %v780 = vlaneseq
    %v781 = vshrl.u32 %v780, 7
    %v782 = vsub.s32 %v779, %v781
    %v783 = vrot.slane %v266, %v782
    %vm784 = vcmask 392512
    %v785 = vsel %vm784, %v783, %v778
    %v786 = vadd.s32 %v746, 4294967248
    %v787 = vlaneseq
    %v788 = vshrl.u32 %v787, 7
    %v789 = vsub.s32 %v786, %v788
    %v790 = vrot.slane %v269, %v789
    %vm791 = vcmask 458112
    %v792 = vsel %vm791, %v790, %v785
    %v793 = vadd.s32 %v746, 4294967240
    %v794 = vlaneseq
    %v795 = vshrl.u32 %v794, 7
    %v796 = vsub.s32 %v793, %v795
    %v797 = vrot.slane %v272, %v796
    %vm798 = vcmask 523712
    %v799 = vsel %vm798, %v797, %v792
    %v800 = vadd.s32 %v746, 4294967232
    %v801 = vlaneseq
    %v802 = vshrl.u32 %v801, 7
    %v803 = vsub.s32 %v800, %v802
    %v804 = vrot.slane %v275, %v803
    %vm805 = vcmask 589312
    %v806 = vsel %vm805, %v804, %v799
    %v807 = vadd.s32 %v746, 4294967224
    %v808 = vlaneseq
    %v809 = vshrl.u32 %v808, 7
    %v810 = vsub.s32 %v807, %v809
    %v811 = vrot.slane %v278, %v810
    %vm812 = vcmask 654912
    %v813 = vsel %vm812, %v811, %v806
    %v814 = vadd.s32 %v746, 4294967216
    %v815 = vlaneseq
    %v816 = vshrl.u32 %v815, 7
    %v817 = vsub.s32 %v814, %v816
    %v818 = vrot.slane %v281, %v817
    %vm819 = vcmask 720512
    %v820 = vsel %vm819, %v818, %v813
    %v821 = vadd.s32 %v746, 4294967208
    %v822 = vlaneseq
    %v823 = vshrl.u32 %v822, 7
    %v824 = vsub.s32 %v821, %v823
    %v825 = vrot.slane %v284, %v824
    %vm826 = vcmask 786112
    %v827 = vsel %vm826, %v825, %v820
    %v828 = vadd.s32 %v746, 4294967200
    %v829 = vlaneseq
    %v830 = vshrl.u32 %v829, 7
    %v831 = vsub.s32 %v828, %v830
    %v832 = vrot.slane %v287, %v831
    %vm833 = vcmask 851712
    %v834 = vsel %vm833, %v832, %v827
    %v835 = vadd.s32 %v746, 4294967192
    %v836 = vlaneseq
    %v837 = vshrl.u32 %v836, 7
    %v838 = vsub.s32 %v835, %v837
    %v839 = vrot.slane %v290, %v838
    %vm840 = vcmask 917312
    %v841 = vsel %vm840, %v839, %v834
    %v842 = vadd.s32 %v746, 4294967184
    %v843 = vlaneseq
    %v844 = vshrl.u32 %v843, 7
    %v845 = vsub.s32 %v842, %v844
    %v846 = vrot.slane %v293, %v845
    %vm847 = vcmask 982912
    %v848 = vsel %vm847, %v846, %v841
    %v849 = vadd.s32 %v746, 4294967176
    %v850 = vlaneseq
    %v851 = vshrl.u32 %v850, 7
    %v852 = vsub.s32 %v849, %v851
    %v853 = vrot.slane %v296, %v852
    %vm854 = vcmask 1048512
    %v855 = vsel %vm854, %v853, %v848
    %857 = vst [vmem:[#allocation9] sm:$0x1] %v855
    %v874 = vlaneseq
    %v875 = vshrl.u32 %v874, 7
    %v876 = vsub.s32 %v746, %v875
    %v877 = vrot.slane %v315, %v876
    %v878 = vlaneseq
    %v879 = vshrl.u32 %v878, 7
    %v880 = vsub.s32 %v751, %v879
    %v881 = vrot.slane %v318, %v880
    %v882 = vsel %vm756, %v881, %v877
    %v883 = vlaneseq
    %v884 = vshrl.u32 %v883, 7
    %v885 = vsub.s32 %v758, %v884
    %v886 = vrot.slane %v321, %v885
    %v887 = vsel %vm763, %v886, %v882
    %v888 = vlaneseq
    %v889 = vshrl.u32 %v888, 7
    %v890 = vsub.s32 %v765, %v889
    %v891 = vrot.slane %v324, %v890
    %v892 = vsel %vm770, %v891, %v887
    %v893 = vlaneseq
    %v894 = vshrl.u32 %v893, 7
    %v895 = vsub.s32 %v772, %v894
    %v896 = vrot.slane %v327, %v895
    %v897 = vsel %vm777, %v896, %v892
    %v898 = vlaneseq
    %v899 = vshrl.u32 %v898, 7
    %v900 = vsub.s32 %v779, %v899
    %v901 = vrot.slane %v330, %v900
    %v902 = vsel %vm784, %v901, %v897
    %v903 = vlaneseq
    %v904 = vshrl.u32 %v903, 7
    %v905 = vsub.s32 %v786, %v904
    %v906 = vrot.slane %v333, %v905
    %v907 = vsel %vm791, %v906, %v902
    %v908 = vlaneseq
    %v909 = vshrl.u32 %v908, 7
    %v910 = vsub.s32 %v793, %v909
    %v911 = vrot.slane %v336, %v910
    %v912 = vsel %vm798, %v911, %v907
    %v913 = vlaneseq
    %v914 = vshrl.u32 %v913, 7
    %v915 = vsub.s32 %v800, %v914
    %v916 = vrot.slane %v339, %v915
    %v917 = vsel %vm805, %v916, %v912
    %v918 = vlaneseq
    %v919 = vshrl.u32 %v918, 7
    %v920 = vsub.s32 %v807, %v919
    %v921 = vrot.slane %v342, %v920
    %v922 = vsel %vm812, %v921, %v917
    %v923 = vlaneseq
    %v924 = vshrl.u32 %v923, 7
    %v925 = vsub.s32 %v814, %v924
    %v926 = vrot.slane %v345, %v925
    %v927 = vsel %vm819, %v926, %v922
    %v928 = vlaneseq
    %v929 = vshrl.u32 %v928, 7
    %v930 = vsub.s32 %v821, %v929
    %v931 = vrot.slane %v348, %v930
    %v932 = vsel %vm826, %v931, %v927
    %v933 = vlaneseq
    %v934 = vshrl.u32 %v933, 7
    %v935 = vsub.s32 %v828, %v934
    %v936 = vrot.slane %v351, %v935
    %v937 = vsel %vm833, %v936, %v932
    %v938 = vlaneseq
    %v939 = vshrl.u32 %v938, 7
    %v940 = vsub.s32 %v835, %v939
    %v941 = vrot.slane %v354, %v940
    %v942 = vsel %vm840, %v941, %v937
    %v943 = vlaneseq
    %v944 = vshrl.u32 %v943, 7
    %v945 = vsub.s32 %v842, %v944
    %v946 = vrot.slane %v357, %v945
    %v947 = vsel %vm847, %v946, %v942
    %v948 = vlaneseq
    %v949 = vshrl.u32 %v948, 7
    %v950 = vsub.s32 %v849, %v949
    %v951 = vrot.slane %v360, %v950
    %v952 = vsel %vm854, %v951, %v947
    %954 = vst [vmem:[#allocation9 + $0x1] sm:$0x1] %v952
    %v971 = vlaneseq
    %v972 = vshrl.u32 %v971, 7
    %v973 = vsub.s32 %v746, %v972
    %v974 = vrot.slane %v713, %v973
    %v975 = vlaneseq
    %v976 = vshrl.u32 %v975, 7
    %v977 = vsub.s32 %v751, %v976
    %v978 = vrot.slane %v714, %v977
    %v979 = vsel %vm756, %v978, %v974
    %v980 = vlaneseq
    %v981 = vshrl.u32 %v980, 7
    %v982 = vsub.s32 %v758, %v981
    %v983 = vrot.slane %v715, %v982
    %v984 = vsel %vm763, %v983, %v979
    %v985 = vlaneseq
    %v986 = vshrl.u32 %v985, 7
    %v987 = vsub.s32 %v765, %v986
    %v988 = vrot.slane %v716, %v987
    %v989 = vsel %vm770, %v988, %v984
    %v990 = vlaneseq
    %v991 = vshrl.u32 %v990, 7
    %v992 = vsub.s32 %v772, %v991
    %v993 = vrot.slane %v717, %v992
    %v994 = vsel %vm777, %v993, %v989
    %v995 = vlaneseq
    %v996 = vshrl.u32 %v995, 7
    %v997 = vsub.s32 %v779, %v996
    %v998 = vrot.slane %v718, %v997
    %v999 = vsel %vm784, %v998, %v994
    %v1000 = vlaneseq
    %v1001 = vshrl.u32 %v1000, 7
    %v1002 = vsub.s32 %v786, %v1001
    %v1003 = vrot.slane %v719, %v1002
    %v1004 = vsel %vm791, %v1003, %v999
    %v1005 = vlaneseq
    %v1006 = vshrl.u32 %v1005, 7
    %v1007 = vsub.s32 %v793, %v1006
    %v1008 = vrot.slane %v720, %v1007
    %v1009 = vsel %vm798, %v1008, %v1004
    %v1010 = vlaneseq
    %v1011 = vshrl.u32 %v1010, 7
    %v1012 = vsub.s32 %v800, %v1011
    %v1013 = vrot.slane %v721, %v1012
    %v1014 = vsel %vm805, %v1013, %v1009
    %v1015 = vlaneseq
    %v1016 = vshrl.u32 %v1015, 7
    %v1017 = vsub.s32 %v807, %v1016
    %v1018 = vrot.slane %v722, %v1017
    %v1019 = vsel %vm812, %v1018, %v1014
    %v1020 = vlaneseq
    %v1021 = vshrl.u32 %v1020, 7
    %v1022 = vsub.s32 %v814, %v1021
    %v1023 = vrot.slane %v723, %v1022
    %v1024 = vsel %vm819, %v1023, %v1019
    %v1025 = vlaneseq
    %v1026 = vshrl.u32 %v1025, 7
    %v1027 = vsub.s32 %v821, %v1026
    %v1028 = vrot.slane %v724, %v1027
    %v1029 = vsel %vm826, %v1028, %v1024
    %v1030 = vlaneseq
    %v1031 = vshrl.u32 %v1030, 7
    %v1032 = vsub.s32 %v828, %v1031
    %v1033 = vrot.slane %v725, %v1032
    %v1034 = vsel %vm833, %v1033, %v1029
    %v1035 = vlaneseq
    %v1036 = vshrl.u32 %v1035, 7
    %v1037 = vsub.s32 %v835, %v1036
    %v1038 = vrot.slane %v726, %v1037
    %v1039 = vsel %vm840, %v1038, %v1034
    %v1040 = vlaneseq
    %v1041 = vshrl.u32 %v1040, 7
    %v1042 = vsub.s32 %v842, %v1041
    %v1043 = vrot.slane %v727, %v1042
    %v1044 = vsel %vm847, %v1043, %v1039
    %v1045 = vlaneseq
    %v1046 = vshrl.u32 %v1045, 7
    %v1047 = vsub.s32 %v849, %v1046
    %v1048 = vrot.slane %v728, %v1047
    %v1049 = vsel %vm854, %v1048, %v1044
    %1051 = vst [vmem:[#allocation9 + $0x2] sm:$0x1] %v1049
    // Predicated region
    $region106: #{tpu_custom_call.1} parent=1 // pred_check
      _
    $region107: #{tpu_custom_call.1} parent=1 // pred_check_branch
      %1053 = sbr.rel (0) target = $region109
    $region108: #{tpu_custom_call.1} parent=1 // pred_region
      %s1055 = ssub.s32 64, 64
      %1056 = vsyncadd [#allocation10], %s1055
      %s1058 = sshll.u32 [#allocation9], 4
      %s1059 = int_to_ptr.vmem [resolvable:$true] %s1058
      %1061 = dma.vmem_to_hbm [thread:$0]  %s1059, 64, %s4, [#allocation10]
    $region109: #{tpu_custom_call.1} parent=1 // pred_fallthru
      _
    // Predicated region
    $region110: #{tpu_custom_call.1} parent=1 // pred_check
      _
    $region111: #{tpu_custom_call.1} parent=1 // pred_check_branch
      %1063 = sbr.rel (0) target = $region113
    $region112: #{tpu_custom_call.1} parent=1 // pred_region
      %1064 = dma.done [#allocation10], 64
    $region113: #{tpu_custom_call.1} parent=1 // pred_fallthru
      _
    %1065 = vsyncpa [#allocation10], 1
  %1066 = vsyncmov [#allocation5]
  %s1067 = vpop.sfrf %1066
  %p1068 = scmp.eq.s32.totalorder %s1067, 0
  %p1069 = pneg %p1068
  %1071 = shalt.err (%p1069)
  %s1072 = scalar_lea.sflag [#allocation5], 1
  %1073 = vsyncmov %s1072
  %s1074 = vpop.sfrf %1073
  %p1075 = scmp.eq.s32.totalorder %s1074, 0
  %p1076 = pneg %p1075
  %1078 = shalt.err (%p1076)
  %s1079 = scalar_lea.sflag [#allocation5], 2
  %1080 = vsyncmov %s1079
  %s1081 = vpop.sfrf %1080
  %p1082 = scmp.eq.s32.totalorder %s1081, 0
  %p1083 = pneg %p1082
  %1085 = shalt.err (%p1083)

</llo_original>
